<compile_context>
chip_gen: v7x
topology: tpu7x:2x2x1
jax: 0.10.0
libtpu: 0.0.40
codegen_flags: <defaults>
</compile_context>

<pallas_src>
import functools

import jax
import jax.numpy as jnp
from jax.experimental import pallas as pl
from jax.experimental.pallas import tpu as pltpu

LEAKY_SLOPE = 0.01      # PyTorch nn.LeakyReLU default
BN_EPS = 1e-5           # PyTorch nn.BatchNorm2d default
MXU_DTYPE = jnp.bfloat16  # MXU input precision (accumulation stays f32)


def reduce_block_kernel(patches_ref, w_ref, gamma_ref, beta_ref, out_ref,
                        sum_ref, sumsq_ref, scale_ref, shift_ref, *, m_total):
    """Two-sweep fused conv-matmul + BatchNorm(batch stats) + LeakyReLU.

    patches_ref : (K, tm)    bf16 im2col patch tile (lane-dense over M)
    w_ref       : (Cout, K)  bf16 conv weights
    gamma_ref   : (Cout, 1)  f32
    beta_ref    : (Cout, 1)  f32
    out_ref     : (Cout, tm) f32 output tile
    scratch     : per-channel sum / sumsq / scale / shift, all (Cout, 1) f32
    """
    sweep = pl.program_id(0)
    tile = pl.program_id(1)
    n_tiles = pl.num_programs(1)

    # Conv-as-matmul on the MXU: (Cout, K) @ (K, tm) -> (Cout, tm), f32 acc.
    y = jnp.dot(w_ref[...], patches_ref[...], preferred_element_type=jnp.float32)

    @pl.when(sweep == 0)
    def _stats_sweep():
        @pl.when(tile == 0)
        def _init():
            sum_ref[...] = jnp.zeros_like(sum_ref)
            sumsq_ref[...] = jnp.zeros_like(sumsq_ref)

        # Single-pass moments: accumulate sum(y) and sum(y^2) per channel
        # (cross-lane reduction -> XLU, free slot relative to the VPU).
        sum_ref[...] += jnp.sum(y, axis=-1, keepdims=True)
        sumsq_ref[...] += jnp.sum(y * y, axis=-1, keepdims=True)

        @pl.when(tile == n_tiles - 1)
        def _finalize():
            inv_m = 1.0 / m_total
            mean = sum_ref[...] * inv_m
            var = sumsq_ref[...] * inv_m - mean * mean      # biased var (normalization)
            inv_std = jax.lax.rsqrt(var + BN_EPS)
            scale = gamma_ref[...] * inv_std
            scale_ref[...] = scale
            shift_ref[...] = beta_ref[...] - mean * scale

    @pl.when(sweep == 1)
    def _apply_sweep():
        # Fused per-channel affine (scale*y + shift) then LeakyReLU.
        y_bn = y * scale_ref[...] + shift_ref[...]
        out_ref[...] = jnp.where(y_bn >= 0, y_bn, LEAKY_SLOPE * y_bn)


def _pick_m_tile(M):
    if M % 128 != 0:
        return M                      # small problem: one full block (== array dim)
    for cand in (512, 256, 128):      # ~512 lanes/tile is the measured sweet spot
        if M % cand == 0:
            return cand
    return 128


def reduce_block(x, w, gamma, beta):
    """x: (N, Cin, H, W) f32 NCHW; w: (Cout, Cin, 4, 4); gamma/beta: (Cout,)."""
    N, Cin, H, W = x.shape
    Cout = w.shape[0]
    KH = KW = 4
    Ho, Wo = H // 2, W // 2
    K = Cin * KH * KW
    M = N * Ho * Wo

    # --- glue: im2col (stride 2, pad 1), lane-dense (K, M) layout -----------
    xp = jnp.pad(x, ((0, 0), (0, 0), (1, 1), (1, 1)))   # (N, Cin, H+2, W+2)
    cols = []
    for kh in range(KH):
        for kw in range(KW):
            cols.append(
                jax.lax.slice(
                    xp,
                    (0, 0, kh, kw),
                    (N, Cin, kh + 2 * (Ho - 1) + 1, kw + 2 * (Wo - 1) + 1),
                    (1, 1, 2, 2),
                ))                                       # each (N, Cin, Ho, Wo)
    taps = jnp.stack(cols, axis=0)                       # (16, N, Cin, Ho, Wo)
    patches = jnp.transpose(taps, (2, 0, 1, 3, 4))       # (Cin, 16, N, Ho, Wo)
    # K index = ci*16 + kh*4 + kw  -> matches w.reshape(Cout, Cin*4*4)
    patches = patches.reshape(K, M).astype(MXU_DTYPE)    # (K, M) bf16

    w_mat = w.reshape(Cout, K).astype(MXU_DTYPE)         # (Cout, K) bf16
    gamma2 = gamma.reshape(Cout, 1).astype(jnp.float32)
    beta2 = beta.reshape(Cout, 1).astype(jnp.float32)

    tm = _pick_m_tile(M)
    n_tiles = M // tm

    # --- VMEM budget / compiler params --------------------------------------
    itemsize = jnp.dtype(MXU_DTYPE).itemsize
    tile_bytes = 2 * (K * tm * itemsize + Cout * tm * 4)   # double-buffered in/out
    fixed_bytes = Cout * K * itemsize + 4 * Cout * 4 + (2 << 20)
    vmem_limit = int(min(max(tile_bytes + fixed_bytes, 16 << 20), 48 << 20))

    cost = pl.CostEstimate(
        flops=2 * (2 * M * K * Cout) + 8 * M * Cout,
        transcendentals=Cout,
        bytes_accessed=2 * patches.size * itemsize + w_mat.size * itemsize + Cout * M * 4,
    )

    out = pl.pallas_call(
        functools.partial(reduce_block_kernel, m_total=float(M)),
        out_shape=jax.ShapeDtypeStruct((Cout, M), jnp.float32),
        grid_spec=pltpu.PrefetchScalarGridSpec(
            num_scalar_prefetch=0,
            grid=(2, n_tiles),                             # (sweep, M tile)
            in_specs=[
                pl.BlockSpec((K, tm), lambda s, i: (0, i)),
                pl.BlockSpec((Cout, K), lambda s, i: (0, 0)),
                pl.BlockSpec((Cout, 1), lambda s, i: (0, 0)),
                pl.BlockSpec((Cout, 1), lambda s, i: (0, 0)),
            ],
            # i*s pins the output to block 0 during the stats sweep (no per-tile
            # dead writebacks); sweep 1 writes every block with the final values.
            out_specs=pl.BlockSpec((Cout, tm), lambda s, i: (0, i * s)),
            scratch_shapes=[
                pltpu.VMEM((Cout, 1), jnp.float32),        # sum(y)
                pltpu.VMEM((Cout, 1), jnp.float32),        # sum(y^2)
                pltpu.VMEM((Cout, 1), jnp.float32),        # scale = gamma*rsqrt(var+eps)
                pltpu.VMEM((Cout, 1), jnp.float32),        # shift = beta - mean*scale
            ],
        ),
        compiler_params=pltpu.CompilerParams(
            dimension_semantics=("arbitrary", "arbitrary"),
            vmem_limit_bytes=vmem_limit,
        ),
        cost_estimate=cost,
    )(patches, w_mat, gamma2, beta2)

    # --- glue: back to NCHW ---------------------------------------------------
    y = out.reshape(Cout, N, Ho, Wo)
    return jnp.transpose(y, (1, 0, 2, 3))                 # (N, Cout, Ho, Wo)


def reduce_block_reference(x, w, gamma, beta, conv_input_dtype=jnp.float32):
    """Pure-JAX reference (mirrors the PyTorch forward in training mode).

    conv_input_dtype lets the reference model the kernel's bf16 MXU-input
    precision while keeping accumulation and BN math in f32.
    """
    y = jax.lax.conv_general_dilated(
        x.astype(conv_input_dtype), w.astype(conv_input_dtype),
        window_strides=(2, 2),
        padding=((1, 1), (1, 1)),
        dimension_numbers=("NCHW", "OIHW", "NCHW"),
        preferred_element_type=jnp.float32,
    )
    mean = jnp.mean(y, axis=(0, 2, 3), keepdims=True)
    var = jnp.mean((y - mean) ** 2, axis=(0, 2, 3), keepdims=True)
    y_hat = (y - mean) * jax.lax.rsqrt(var + BN_EPS)
    y_bn = y_hat * gamma.reshape(1, -1, 1, 1) + beta.reshape(1, -1, 1, 1)
    return jnp.where(y_bn >= 0, y_bn, LEAKY_SLOPE * y_bn)


if __name__ == "__main__":
    key = jax.random.PRNGKey(0)
    k_x, k_w, k_g, k_b = jax.random.split(key, 4)

    # Small shapes consistent with the module: batch=2, Cin=4, H=W=16, Cout=8.
    N, Cin, H, W = 2, 4, 16, 16
    Cout = 8

    x = jax.random.normal(k_x, (N, Cin, H, W), dtype=jnp.float32)
    fan_in = Cin * 4 * 4
    bound = 1.0 / (fan_in ** 0.5)
    w = jax.random.uniform(k_w, (Cout, Cin, 4, 4), jnp.float32, -bound, bound)
    gamma = jax.random.uniform(k_g, (Cout,), jnp.float32, 0.5, 1.5)
    beta = 0.1 * jax.random.normal(k_b, (Cout,), dtype=jnp.float32)

    out = jax.block_until_ready(reduce_block(x, w, gamma, beta))
    assert out.shape == (N, Cout, H // 2, W // 2), out.shape

    # Tight check vs a reference matching the kernel's MXU precision
    # (bf16 conv inputs, f32 accumulation / BN math).
    ref_matched = jax.block_until_ready(
        reduce_block_reference(x, w, gamma, beta, conv_input_dtype=MXU_DTYPE))
    assert jnp.allclose(out, ref_matched, atol=1e-3, rtol=1e-3), \
        float(jnp.max(jnp.abs(out - ref_matched)))

    # Sanity bound vs full-f32 module semantics (difference is only the bf16
    # MXU-input rounding).
    ref_f32 = jax.block_until_ready(reduce_block_reference(x, w, gamma, beta))
    assert jnp.allclose(out, ref_f32, atol=1e-1, rtol=1e-1), \
        float(jnp.max(jnp.abs(out - ref_f32)))

    print("KERNEL_OK")
</pallas_src>

<mosaic_0001>
module attributes {stable_mosaic.version = 11 : i64} {
  func.func @reduce_block_kernel(%arg0: i32, %arg1: i32, %arg2: memref<64x128xbf16, #tpu.memory_space<vmem>>, %arg3: memref<8x64xbf16, #tpu.memory_space<vmem>>, %arg4: memref<8x1xf32, #tpu.memory_space<vmem>>, %arg5: memref<8x1xf32, #tpu.memory_space<vmem>>, %arg6: memref<8x128xf32, #tpu.memory_space<vmem>>, %arg7: memref<8x1xf32, #tpu.memory_space<vmem>>, %arg8: memref<8x1xf32, #tpu.memory_space<vmem>>, %arg9: memref<8x1xf32, #tpu.memory_space<vmem>>, %arg10: memref<8x1xf32, #tpu.memory_space<vmem>>) attributes {dimension_semantics = [#tpu.dimension_semantics<arbitrary>, #tpu.dimension_semantics<arbitrary>], iteration_bounds = array<i64: 2, 1>, scalar_prefetch = 0 : i64, scratch_operands = 4 : i64, tpu.core_type = #tpu.core_type<tc>, window_params = [{transform_indices = @transform_0, window_bounds = array<i64: 64, 128>}, {pipeline_mode = #tpu.pipeline_mode<synchronous>, transform_indices = @transform_1, window_bounds = array<i64: 8, 64>}, {pipeline_mode = #tpu.pipeline_mode<synchronous>, transform_indices = @transform_2, window_bounds = array<i64: 8, 1>}, {pipeline_mode = #tpu.pipeline_mode<synchronous>, transform_indices = @transform_3, window_bounds = array<i64: 8, 1>}, {transform_indices = @transform_4, window_bounds = array<i64: 8, 128>}]} {
    %c0 = arith.constant 0 : index
    %c0_0 = arith.constant 0 : index
    %0 = vector.load %arg3[%c0, %c0_0] : memref<8x64xbf16, #tpu.memory_space<vmem>>, vector<8x64xbf16>
    %c0_1 = arith.constant 0 : index
    %c0_2 = arith.constant 0 : index
    %1 = vector.load %arg2[%c0_1, %c0_2] : memref<64x128xbf16, #tpu.memory_space<vmem>>, vector<64x128xbf16>
    %cst = arith.constant dense<0.000000e+00> : vector<8x128xf32>
    %2 = tpu.matmul %0, %1, %cst {dimension_numbers = #tpu.dot_dimension_numbers<[1], [0], [0], [1], [0, 0, 1, 1], [], []>} : vector<8x64xbf16>, vector<64x128xbf16>, vector<8x128xf32> -> vector<8x128xf32>
    %c0_i32 = arith.constant 0 : i32
    %3 = arith.cmpi eq, %arg0, %c0_i32 : i32
    %4 = arith.extui %3 : i1 to i32
    %c0_i32_3 = arith.constant 0 : i32
    %5 = arith.cmpi ne, %4, %c0_i32_3 : i32
    scf.if %5 {
      %c0_i32_5 = arith.constant 0 : i32
      %9 = arith.cmpi eq, %arg1, %c0_i32_5 : i32
      %10 = arith.extui %9 : i1 to i32
      %c0_i32_6 = arith.constant 0 : i32
      %11 = arith.cmpi ne, %10, %c0_i32_6 : i32
      scf.if %11 {
        %cst_19 = arith.constant 0.000000e+00 : f32
        %26 = vector.broadcast %cst_19 : f32 to vector<8x1xf32>
        %c0_20 = arith.constant 0 : index
        %c0_21 = arith.constant 0 : index
        %27 = vector.load %arg7[%c0_20, %c0_21] : memref<8x1xf32, #tpu.memory_space<vmem>>, vector<8x1xf32>
        tpu.vector_store %arg7[%c0_20, %c0_21], %26 {strides = array<i32>} : memref<8x1xf32, #tpu.memory_space<vmem>>, vector<8x1xf32>,
        %cst_22 = arith.constant 0.000000e+00 : f32
        %28 = vector.broadcast %cst_22 : f32 to vector<8x1xf32>
        %c0_23 = arith.constant 0 : index
        %c0_24 = arith.constant 0 : index
        %29 = vector.load %arg8[%c0_23, %c0_24] : memref<8x1xf32, #tpu.memory_space<vmem>>, vector<8x1xf32>
        tpu.vector_store %arg8[%c0_23, %c0_24], %28 {strides = array<i32>} : memref<8x1xf32, #tpu.memory_space<vmem>>, vector<8x1xf32>,
      } else {
      }
      %c0_7 = arith.constant 0 : index
      %c0_8 = arith.constant 0 : index
      %12 = vector.load %arg7[%c0_7, %c0_8] : memref<8x1xf32, #tpu.memory_space<vmem>>, vector<8x1xf32>
      %cst_9 = arith.constant dense<0.000000e+00> : vector<8xf32>
      %13 = vector.multi_reduction <add>, %2, %cst_9 [1] : vector<8x128xf32> to vector<8xf32>
      %14 = vector.shape_cast %13 : vector<8xf32> to vector<8x1xf32>
      %15 = arith.addf %12, %14 : vector<8x1xf32>
      %c0_10 = arith.constant 0 : index
      %c0_11 = arith.constant 0 : index
      %16 = vector.load %arg7[%c0_10, %c0_11] : memref<8x1xf32, #tpu.memory_space<vmem>>, vector<8x1xf32>
      tpu.vector_store %arg7[%c0_10, %c0_11], %15 {strides = array<i32>} : memref<8x1xf32, #tpu.memory_space<vmem>>, vector<8x1xf32>,
      %c0_12 = arith.constant 0 : index
      %c0_13 = arith.constant 0 : index
      %17 = vector.load %arg8[%c0_12, %c0_13] : memref<8x1xf32, #tpu.memory_space<vmem>>, vector<8x1xf32>
      %18 = arith.mulf %2, %2 : vector<8x128xf32>
      %cst_14 = arith.constant dense<0.000000e+00> : vector<8xf32>
      %19 = vector.multi_reduction <add>, %18, %cst_14 [1] : vector<8x128xf32> to vector<8xf32>
      %20 = vector.shape_cast %19 : vector<8xf32> to vector<8x1xf32>
      %21 = arith.addf %17, %20 : vector<8x1xf32>
      %c0_15 = arith.constant 0 : index
      %c0_16 = arith.constant 0 : index
      %22 = vector.load %arg8[%c0_15, %c0_16] : memref<8x1xf32, #tpu.memory_space<vmem>>, vector<8x1xf32>
      tpu.vector_store %arg8[%c0_15, %c0_16], %21 {strides = array<i32>} : memref<8x1xf32, #tpu.memory_space<vmem>>, vector<8x1xf32>,
      %c0_i32_17 = arith.constant 0 : i32
      %23 = arith.cmpi eq, %arg1, %c0_i32_17 : i32
      %24 = arith.extui %23 : i1 to i32
      %c0_i32_18 = arith.constant 0 : i32
      %25 = arith.cmpi ne, %24, %c0_i32_18 : i32
      scf.if %25 {
        %c0_19 = arith.constant 0 : index
        %c0_20 = arith.constant 0 : index
        %26 = vector.load %arg7[%c0_19, %c0_20] : memref<8x1xf32, #tpu.memory_space<vmem>>, vector<8x1xf32>
        %cst_21 = arith.constant 7.812500e-03 : f32
        %27 = vector.broadcast %cst_21 : f32 to vector<8x1xf32>
        %28 = arith.mulf %26, %27 : vector<8x1xf32>
        %c0_22 = arith.constant 0 : index
        %c0_23 = arith.constant 0 : index
        %29 = vector.load %arg8[%c0_22, %c0_23] : memref<8x1xf32, #tpu.memory_space<vmem>>, vector<8x1xf32>
        %cst_24 = arith.constant 7.812500e-03 : f32
        %30 = vector.broadcast %cst_24 : f32 to vector<8x1xf32>
        %31 = arith.mulf %29, %30 : vector<8x1xf32>
        %32 = arith.mulf %28, %28 : vector<8x1xf32>
        %33 = arith.subf %31, %32 : vector<8x1xf32>
        %cst_25 = arith.constant 9.99999974E-6 : f32
        %34 = vector.broadcast %cst_25 : f32 to vector<8x1xf32>
        %35 = arith.addf %33, %34 : vector<8x1xf32>
        %36 = math.rsqrt %35 : vector<8x1xf32>
        %c0_26 = arith.constant 0 : index
        %c0_27 = arith.constant 0 : index
        %37 = vector.load %arg4[%c0_26, %c0_27] : memref<8x1xf32, #tpu.memory_space<vmem>>, vector<8x1xf32>
        %38 = arith.mulf %37, %36 : vector<8x1xf32>
        %c0_28 = arith.constant 0 : index
        %c0_29 = arith.constant 0 : index
        %39 = vector.load %arg9[%c0_28, %c0_29] : memref<8x1xf32, #tpu.memory_space<vmem>>, vector<8x1xf32>
        tpu.vector_store %arg9[%c0_28, %c0_29], %38 {strides = array<i32>} : memref<8x1xf32, #tpu.memory_space<vmem>>, vector<8x1xf32>,
        %c0_30 = arith.constant 0 : index
        %c0_31 = arith.constant 0 : index
        %40 = vector.load %arg5[%c0_30, %c0_31] : memref<8x1xf32, #tpu.memory_space<vmem>>, vector<8x1xf32>
        %41 = arith.mulf %28, %38 : vector<8x1xf32>
        %42 = arith.subf %40, %41 : vector<8x1xf32>
        %c0_32 = arith.constant 0 : index
        %c0_33 = arith.constant 0 : index
        %43 = vector.load %arg10[%c0_32, %c0_33] : memref<8x1xf32, #tpu.memory_space<vmem>>, vector<8x1xf32>
        tpu.vector_store %arg10[%c0_32, %c0_33], %42 {strides = array<i32>} : memref<8x1xf32, #tpu.memory_space<vmem>>, vector<8x1xf32>,
      } else {
      }
    } else {
    }
    %c1_i32 = arith.constant 1 : i32
    %6 = arith.cmpi eq, %arg0, %c1_i32 : i32
    %7 = arith.extui %6 : i1 to i32
    %c0_i32_4 = arith.constant 0 : i32
    %8 = arith.cmpi ne, %7, %c0_i32_4 : i32
    scf.if %8 {
      %c0_5 = arith.constant 0 : index
      %c0_6 = arith.constant 0 : index
      %9 = vector.load %arg9[%c0_5, %c0_6] : memref<8x1xf32, #tpu.memory_space<vmem>>, vector<8x1xf32>
      %10 = vector.broadcast %9 : vector<8x1xf32> to vector<8x128xf32>
      %11 = arith.mulf %2, %10 : vector<8x128xf32>
      %c0_7 = arith.constant 0 : index
      %c0_8 = arith.constant 0 : index
      %12 = vector.load %arg10[%c0_7, %c0_8] : memref<8x1xf32, #tpu.memory_space<vmem>>, vector<8x1xf32>
      %13 = vector.broadcast %12 : vector<8x1xf32> to vector<8x128xf32>
      %14 = arith.addf %11, %13 : vector<8x128xf32>
      %cst_9 = arith.constant 0.000000e+00 : f32
      %15 = vector.broadcast %cst_9 : f32 to vector<8x128xf32>
      %16 = arith.cmpf oge, %14, %15 : vector<8x128xf32>
      %cst_10 = arith.constant 0.00999999977 : f32
      %17 = vector.broadcast %cst_10 : f32 to vector<8x128xf32>
      %18 = arith.mulf %17, %14 : vector<8x128xf32>
      %19 = arith.select %16, %14, %18 : vector<8x128xi1>, vector<8x128xf32>
      %c0_11 = arith.constant 0 : index
      %c0_12 = arith.constant 0 : index
      %20 = vector.load %arg6[%c0_11, %c0_12] : memref<8x128xf32, #tpu.memory_space<vmem>>, vector<8x128xf32>
      tpu.vector_store %arg6[%c0_11, %c0_12], %19 {strides = array<i32>} : memref<8x128xf32, #tpu.memory_space<vmem>>, vector<8x128xf32>,
    } else {
    }
    return
  }
  func.func @transform_0(%arg0: i32, %arg1: i32) -> (i32, i32) {
    %c0_i32 = arith.constant 0 : i32
    %c0_i32_0 = arith.constant 0 : i32
    return %c0_i32, %arg1 : i32, i32
  }
  func.func @transform_1(%arg0: i32, %arg1: i32) -> (i32, i32) {
    %c0_i32 = arith.constant 0 : i32
    %c0_i32_0 = arith.constant 0 : i32
    %c0_i32_1 = arith.constant 0 : i32
    return %c0_i32, %c0_i32_0 : i32, i32
  }
  func.func @transform_2(%arg0: i32, %arg1: i32) -> (i32, i32) {
    %c0_i32 = arith.constant 0 : i32
    %c0_i32_0 = arith.constant 0 : i32
    %c0_i32_1 = arith.constant 0 : i32
    return %c0_i32, %c0_i32_0 : i32, i32
  }
  func.func @transform_3(%arg0: i32, %arg1: i32) -> (i32, i32) {
    %c0_i32 = arith.constant 0 : i32
    %c0_i32_0 = arith.constant 0 : i32
    %c0_i32_1 = arith.constant 0 : i32
    return %c0_i32, %c0_i32_0 : i32, i32
  }
  func.func @transform_4(%arg0: i32, %arg1: i32) -> (i32, i32) {
    %0 = arith.muli %arg1, %arg0 : i32
    %c0_i32 = arith.constant 0 : i32
    %c0_i32_0 = arith.constant 0 : i32
    return %c0_i32, %0 : i32, i32
  }
}

</mosaic_0001>

<llo_original>
// kernel: tpu_custom_call.1
$region0: #{tpu_custom_call.1}
  #allocation0 [shape = 'u32[]', space=smem, size = 0x4, offset = 0x4, fixed_abs, tag = 'smem constant byte address 0x4 - core index']
  #allocation1 [shape = 'u32[144,128]{1,0:T(1,128)}', space=vmem, size = 0x12000, scoped, tag = 'internal scratch']
  #allocation2 [shape = 'f32[8,1]{1,0:T(8,128)}', space=vmem, size = 0x1000, scoped, tag = 'scratch operand']
  #allocation3 [shape = 'f32[8,1]{1,0:T(8,128)}', space=vmem, size = 0x1000, scoped, tag = 'scratch operand']
  #allocation4 [shape = 'f32[8,1]{1,0:T(8,128)}', space=vmem, size = 0x1000, scoped, tag = 'scratch operand']
  #allocation5 [shape = 'f32[8,1]{1,0:T(8,128)}', space=vmem, size = 0x1000, scoped, tag = 'scratch operand']
  %s0 = inlined_call_operand.hbm [shape: bf16[64,128], index: 0, kind: input, shape index: {}]
  %s1 = inlined_call_operand.vmem [shape: bf16[8,64], index: 1, kind: input, shape index: {}]
  %s2 = inlined_call_operand.vmem [shape: f32[8,1], index: 2, kind: input, shape index: {}]
  %s3 = inlined_call_operand.vmem [shape: f32[8,1], index: 3, kind: input, shape index: {}]
  %s4 = inlined_call_operand.hbm [shape: f32[8,128], index: 4, kind: output, shape index: {}]
  %s5 = sld [smem:[#allocation0]]
  $region69: #{tpu_custom_call.1} parent=0
    _
  %s7 = ssub.s32 1, %s5
  %s8 = scalar_select 0, %s7, %s5
  $region1: #{tpu_custom_call.1} parent=0
    #allocation6 [shape = 'u8[16384]{0}', space=vmem, size = 0x4000, scoped, tag = 'input window, operand 0, single buffered']
    #allocation7 [shape = 's32[2]{0}', space=sflag, size = 0x8, scoped, tag = 'scoped memory for tpu_custom_call.1']
    #allocation8 [shape = 's32[2]{0}', space=sflag, size = 0x8, scoped, tag = 'scoped memory for tpu_custom_call.1']
    #allocation9 [shape = 'u8[8192]{0}', space=vmem, size = 0x2000, scoped, tag = 'output window, operand 0']
    %9 = vsyncpa [#allocation7], 0
    %10 = vsyncpa [#allocation8], 0
    %s11 = scalar_lea.sflag [#allocation8], 1
    %12 = vsyncpa %s11, 0
    loop: start=0, step=1, limit=4
    $region2: #{tpu_custom_call.1} parent=1 // loop_pre_header
      _
    $region3: #{tpu_custom_call.1} parent=1 // loop_header
      %s14 = sphi 0, %s18
      %p15 = scmp.ge.s32.totalorder %s14, 4
      %s21 = sphi 0, %s33
      %s22 = sphi 0, %s29
      %s23 = sphi 0, %s21
      %s24 = sphi 0, %s22
      %s25 = sphi 0, %s23
      %s26 = sphi 0, %s24
      %s36 = sphi 0, %s38
      %s39 = sphi 0, %s36
      %s40 = sphi 0, %s39
      %s56 = sphi 0, %s40
      %s60 = sphi 0, %s60
      %s62 = sphi 0, %s60
      %s63 = sphi 0, %s62
      %s77 = sphi 0, %s63
      %s81 = sphi 0, %s81
      %s83 = sphi 0, %s81
      %s84 = sphi 0, %s83
      %s98 = sphi 0, %s84
      %s102 = sphi 0, %s102
      %s104 = sphi 0, %s102
      %s105 = sphi 0, %s104
      %s119 = sphi 0, %s105
      %s127 = sphi 0, %s129
      %s130 = sphi 0, %s127
      %s131 = sphi 0, %s130
      %s147 = sphi 0, %s131
    $region4: #{tpu_custom_call.1} parent=1 // loop_header_branch
      %17 = sbr.rel (%p15) target = $region8
    $region5: #{tpu_custom_call.1} parent=1 // loop_body
      %s19 = ssub.s32 %s14, 1
      %s20 = ssub.s32 %s14, 2
      %s27 = sadd.s32 1, %s22
      %p28 = scmp.ge.s32.totalorder %s27, 1
      %s29 = scalar_select %p28, 0, %s27
      %s30 = sadd.s32 1, %s21
      %s31 = scalar_select %p28, %s30, %s21
      %p32 = scmp.ge.s32.totalorder %s31, 2
      %s33 = scalar_select %p32, 0, %s31
      %s34 = ssub.s32 %s22, %s29
      %p35 = scmp.eq.s32.totalorder %s34, 0
      %s37 = sadd.s32 %s36, 1
      %s38 = scalar_select %p35, %s36, %s37
      %p41 = pneg %p35
      %p42 = scmp.eq.s32.totalorder %s14, 1
      %p43 = por %p41, %p42
      %p44 = scmp.ne.s32.totalorder %s36, %s39
      %p45 = scmp.eq.s32.totalorder %s14, 0
      %p46 = por %p44, %p45
      %p47 = scmp.ne.s32.totalorder %s36, %s39
      %p48 = scmp.eq.s32.totalorder %s19, 1
      %p49 = por %p47, %p48
      %p50 = scmp.ne.s32.totalorder %s39, %s40
      %p51 = scmp.eq.s32.totalorder %s19, 0
      %p52 = por %p50, %p51
      %p53 = scmp.ne.s32.totalorder %s39, %s40
      %p54 = scmp.eq.s32.totalorder %s20, 1
      %p55 = por %p53, %p54
      %p57 = scmp.ne.s32.totalorder %s40, %s56
      %p58 = scmp.eq.s32.totalorder %s20, 0
      %p59 = por %p57, %p58
      %s61 = sadd.s32 %s60, 1
      %p64 = scmp.eq.s32.totalorder %s14, 1
      %p65 = scmp.ne.s32.totalorder %s60, %s62
      %p66 = scmp.eq.s32.totalorder %s14, 0
      %p67 = por %p65, %p66
      %p68 = scmp.ne.s32.totalorder %s60, %s62
      %p69 = scmp.eq.s32.totalorder %s19, 1
      %p70 = por %p68, %p69
      %p71 = scmp.ne.s32.totalorder %s62, %s63
      %p72 = scmp.eq.s32.totalorder %s19, 0
      %p73 = por %p71, %p72
      %p74 = scmp.ne.s32.totalorder %s62, %s63
      %p75 = scmp.eq.s32.totalorder %s20, 1
      %p76 = por %p74, %p75
      %p78 = scmp.ne.s32.totalorder %s63, %s77
      %p79 = scmp.eq.s32.totalorder %s20, 0
      %p80 = por %p78, %p79
      %s82 = sadd.s32 %s81, 1
      %p85 = scmp.eq.s32.totalorder %s14, 1
      %p86 = scmp.ne.s32.totalorder %s81, %s83
      %p87 = scmp.eq.s32.totalorder %s14, 0
      %p88 = por %p86, %p87
      %p89 = scmp.ne.s32.totalorder %s81, %s83
      %p90 = scmp.eq.s32.totalorder %s19, 1
      %p91 = por %p89, %p90
      %p92 = scmp.ne.s32.totalorder %s83, %s84
      %p93 = scmp.eq.s32.totalorder %s19, 0
      %p94 = por %p92, %p93
      %p95 = scmp.ne.s32.totalorder %s83, %s84
      %p96 = scmp.eq.s32.totalorder %s20, 1
      %p97 = por %p95, %p96
      %p99 = scmp.ne.s32.totalorder %s84, %s98
      %p100 = scmp.eq.s32.totalorder %s20, 0
      %p101 = por %p99, %p100
      %s103 = sadd.s32 %s102, 1
      %p106 = scmp.eq.s32.totalorder %s14, 1
      %p107 = scmp.ne.s32.totalorder %s102, %s104
      %p108 = scmp.eq.s32.totalorder %s14, 0
      %p109 = por %p107, %p108
      %p110 = scmp.ne.s32.totalorder %s102, %s104
      %p111 = scmp.eq.s32.totalorder %s19, 1
      %p112 = por %p110, %p111
      %p113 = scmp.ne.s32.totalorder %s104, %s105
      %p114 = scmp.eq.s32.totalorder %s19, 0
      %p115 = por %p113, %p114
      %p116 = scmp.ne.s32.totalorder %s104, %s105
      %p117 = scmp.eq.s32.totalorder %s20, 1
      %p118 = por %p116, %p117
      %p120 = scmp.ne.s32.totalorder %s105, %s119
      %p121 = scmp.eq.s32.totalorder %s20, 0
      %p122 = por %p120, %p121
      %s123 = smul.u32 %s22, %s21
      %s124 = smul.u32 %s29, %s33
      %s125 = ssub.s32 %s123, %s124
      %p126 = scmp.eq.s32.totalorder %s125, 0
      %s128 = sadd.s32 %s127, 1
      %s129 = scalar_select %p126, %s127, %s128
      %p132 = pneg %p126
      %p133 = scmp.eq.s32.totalorder %s14, 1
      %p134 = por %p132, %p133
      %p135 = scmp.ne.s32.totalorder %s127, %s130
      %p136 = scmp.eq.s32.totalorder %s14, 0
      %p137 = por %p135, %p136
      %p138 = scmp.ne.s32.totalorder %s127, %s130
      %p139 = scmp.eq.s32.totalorder %s19, 1
      %p140 = por %p138, %p139
      %p141 = scmp.ne.s32.totalorder %s130, %s131
      %p142 = scmp.eq.s32.totalorder %s19, 0
      %p143 = por %p141, %p142
      %p144 = scmp.ne.s32.totalorder %s130, %s131
      %p145 = scmp.eq.s32.totalorder %s20, 1
      %p146 = por %p144, %p145
      %p148 = scmp.ne.s32.totalorder %s131, %s147
      %p149 = scmp.eq.s32.totalorder %s20, 0
      %p150 = por %p148, %p149
      %p151 = scmp.le.s32.totalorder 1, %s14
      %p152 = scmp.lt.s32.totalorder %s14, 3
      %p153 = pnand %p151, %p152
      %p154 = pneg %p153
      // Predicated region
      $region9: #{tpu_custom_call.1} parent=5 // pred_check
        _
      $region10: #{tpu_custom_call.1} parent=5 // pred_check_branch
        %156 = sbr.rel (%p153) target = $region12
      $region11: #{tpu_custom_call.1} parent=5 // pred_region
        %s157 = ssub.s32 %s14, 1
        // Predicated region
        $region13: #{tpu_custom_call.1} parent=11 // pred_check
          %p158 = pneg %p52
        $region14: #{tpu_custom_call.1} parent=11 // pred_check_branch
          %160 = sbr.rel (%p158) target = $region16
        $region15: #{tpu_custom_call.1} parent=11 // pred_region
          %s162 = ssub.s32 512, 512
          %163 = vsyncadd [#allocation7], %s162
          %s164 = smul.addr %s24, 64
          %s165 = scalar_lea.hbm %s0, %s164
          %s166 = sshll.u32 [#allocation6], 4
          %s167 = int_to_ptr.vmem [resolvable:$true] %s166
          %172 = dma.hbm_to_vmem [thread:$0]  %s165, 512, %s167, [#allocation7], 64, 64, 4
        $region16: #{tpu_custom_call.1} parent=11 // pred_fallthru
          _
        // Predicated region
        $region17: #{tpu_custom_call.1} parent=11 // pred_check
          %p173 = pneg %p73
        $region18: #{tpu_custom_call.1} parent=11 // pred_check_branch
          %175 = sbr.rel (%p173) target = $region20
        $region19: #{tpu_custom_call.1} parent=11 // pred_region
          _
        $region20: #{tpu_custom_call.1} parent=11 // pred_fallthru
          _
        // Predicated region
        $region21: #{tpu_custom_call.1} parent=11 // pred_check
          %p176 = pneg %p94
        $region22: #{tpu_custom_call.1} parent=11 // pred_check_branch
          %178 = sbr.rel (%p176) target = $region24
        $region23: #{tpu_custom_call.1} parent=11 // pred_region
          _
        $region24: #{tpu_custom_call.1} parent=11 // pred_fallthru
          _
        // Predicated region
        $region25: #{tpu_custom_call.1} parent=11 // pred_check
          %p179 = pneg %p115
        $region26: #{tpu_custom_call.1} parent=11 // pred_check_branch
          %181 = sbr.rel (%p179) target = $region28
        $region27: #{tpu_custom_call.1} parent=11 // pred_region
          _
        $region28: #{tpu_custom_call.1} parent=11 // pred_fallthru
          _
      $region12: #{tpu_custom_call.1} parent=5 // pred_fallthru
        _
      %p182 = scmp.lt.s32.totalorder %s14, 2
      // Predicated region
      $region29: #{tpu_custom_call.1} parent=5 // pred_check
        %p183 = pneg %p182
      $region30: #{tpu_custom_call.1} parent=5 // pred_check_branch
        %185 = sbr.rel (%p183) target = $region32
      $region31: #{tpu_custom_call.1} parent=5 // pred_region
        _
      $region32: #{tpu_custom_call.1} parent=5 // pred_fallthru
        _
      %p186 = scmp.le.s32.totalorder 1, %s14
      %p187 = scmp.lt.s32.totalorder %s14, 3
      %p188 = pnand %p186, %p187
      %p189 = pneg %p188
      // Predicated region
      $region33: #{tpu_custom_call.1} parent=5 // pred_check
        _
      $region34: #{tpu_custom_call.1} parent=5 // pred_check_branch
        %191 = sbr.rel (%p188) target = $region36
      $region35: #{tpu_custom_call.1} parent=5 // pred_region
        %s192 = ssub.s32 %s14, 1
        // Predicated region
        $region37: #{tpu_custom_call.1} parent=35 // pred_check
          %p193 = pneg %p52
        $region38: #{tpu_custom_call.1} parent=35 // pred_check_branch
          %195 = sbr.rel (%p193) target = $region40
        $region39: #{tpu_custom_call.1} parent=35 // pred_region
          %196 = dma.done [#allocation7], 512
        $region40: #{tpu_custom_call.1} parent=35 // pred_fallthru
          _
        %p197 = pneg %p52
        %p198 = pneg %p49
        %p199 = pneg %p73
        %p200 = pneg %p70
        %p201 = pneg %p94
        %p202 = pneg %p91
        %p203 = pneg %p115
        %p204 = pneg %p112
        %p205 = pneg %p143
        %p206 = pneg %p140
        %s207 = sand.u32 %s130, 1
        %s208 = scalar_lea.sflag [#allocation8], %s207
        %s209 = sand.u32 %s130, 1
        %s210 = smul.addr %s209, 8
        %s211 = scalar_lea.vmem [#allocation9], %s210
        %s212 = smul.u32 %s24, %s23
        %v214 = vld [vmem:[%s1] sm:$0xf]
        %v215 = vld [vmem:[#allocation6] sm:$0xf]
        %v216 = vld [vmem:[#allocation6 + $0x4] sm:$0xf]
        %v217 = vld [vmem:[#allocation6 + $0x8] sm:$0xf]
        %v218 = vld [vmem:[#allocation6 + $0xc] sm:$0xf]
        %v219 = vld [vmem:[#allocation6 + $0x10] sm:$0xf]
        %v220 = vld [vmem:[#allocation6 + $0x14] sm:$0xf]
        %v221 = vld [vmem:[#allocation6 + $0x18] sm:$0xf]
        %v222 = vld [vmem:[#allocation6 + $0x1c] sm:$0xf]
        %v231 = vunpack.c.l.b16 %v215
        %v232 = vunpack.c.l.b16 %v216
        %v233 = vunpack.c.l.b16 %v217
        %v234 = vunpack.c.l.b16 %v218
        %v235 = vunpack.c.l.b16 %v219
        %v236 = vunpack.c.l.b16 %v220
        %v237 = vunpack.c.l.b16 %v221
        %v238 = vunpack.c.l.b16 %v222
        %v239 = vpack.c.b16 %v232, %v231
        %v240 = vpack.c.b16 %v234, %v233
        %v241 = vpack.c.b16 %v236, %v235
        %v242 = vpack.c.b16 %v238, %v237
        %vm247 = vcmask 523264
        %v249 = vsel %vm247, %v214, 0
        %251 = vmatprep.subr.bf16.mxu0 0
        %252 = vmatpush1.bf16.msra.mxu0 %v239
        %253 = vmatprep.subr.bf16.mxu0 0
        %254 = vmatpush1.bf16.msra.mxu0 %v240
        %255 = vmatprep.subr.bf16.mxu0 0
        %256 = vmatpush1.bf16.msra.mxu0 %v241
        %257 = vmatprep.subr.bf16.mxu0 0
        %258 = vmatpush1.bf16.msra.mxu0 %v242
        %259 = vmatprep.subr.bf16.mxu0 0
        %260 = vmatpush1.bf16.msra.mxu0 0
        %261 = vmatprep.subr.bf16.mxu0 0
        %262 = vmatpush1.bf16.msra.mxu0 0
        %263 = vmatprep.subr.bf16.mxu0 0
        %264 = vmatpush1.bf16.msra.mxu0 0
        %265 = vmatprep.subr.bf16.mxu0 0
        %266 = vmatpush1.bf16.msra.mxu0 0
        %267 = vmatprep.subr.bf16.mxu0 0
        %268 = vmatpush1.bf16.msra.mxu0 0
        %269 = vmatprep.subr.bf16.mxu0 0
        %270 = vmatpush1.bf16.msra.mxu0 0
        %271 = vmatprep.subr.bf16.mxu0 0
        %272 = vmatpush1.bf16.msra.mxu0 0
        %273 = vmatprep.subr.bf16.mxu0 0
        %274 = vmatpush1.bf16.msra.mxu0 0
        %275 = vmatprep.subr.bf16.mxu0 0
        %276 = vmatpush1.bf16.msra.mxu0 0
        %277 = vmatprep.subr.bf16.mxu0 0
        %278 = vmatpush1.bf16.msra.mxu0 0
        %279 = vmatprep.subr.bf16.mxu0 0
        %280 = vmatpush1.bf16.msra.mxu0 0
        %281 = vmatprep.subr.bf16.mxu0 0
        %282 = vmatpush1.bf16.msra.mxu0 0
        %283 = vmatprep.mubr.bf16.mxu0 0
        %284 = vmatmul.mubr.bf16.gmra.mrb[0].mxu0 %v249
        %v285 = vpop.f32.mrb[0].mxu0
        %v286 = vadd.f32 0.0, %v285
        %v287 = vpop.f32.mrb[0].mxu0
        %v288 = vpop.f32.mrb[0].mxu0
        %v289 = vpop.f32.mrb[0].mxu0
        %290 = vdwg.mxu0
        %p291 = scmp.eq.s32.totalorder %s23, 0
        // Predicated region
        $region41: #{tpu_custom_call.1} parent=35 // pred_check
          %p292 = pneg %p291
        $region42: #{tpu_custom_call.1} parent=35 // pred_check_branch
          %294 = sbr.rel (%p292) target = $region44
        $region43: #{tpu_custom_call.1} parent=35 // pred_region
          %p295 = scmp.eq.s32.totalorder %s24, 0
          // Predicated region
          $region45: #{tpu_custom_call.1} parent=43 // pred_check
            %p296 = pneg %p295
          $region46: #{tpu_custom_call.1} parent=43 // pred_check_branch
            %298 = sbr.rel (%p296) target = $region48
          $region47: #{tpu_custom_call.1} parent=43 // pred_region
            %vm299 = vcmask 7168
            %300 = vst.msk [vmem:[#allocation2] sm:$0xff] %vm299, 0.0
            %301 = vst.msk [vmem:[#allocation3] sm:$0xff] %vm299, 0.0
          $region48: #{tpu_custom_call.1} parent=43 // pred_fallthru
            _
          %v302 = vld [vmem:[#allocation2] sm:$0xff]
          %303 = vadd.xlane.f32.xlu0 %v286
          %v304 = vpop.xlane.xlu0 %303
          %v305 = vadd.f32 %v302, %v304
          %vm306 = vcmask 7168
          %307 = vst.msk [vmem:[#allocation2] sm:$0xff] %vm306, %v305
          %v308 = vld [vmem:[#allocation3] sm:$0xff]
          %v309 = vmul.f32 %v286, %v286
          %310 = vadd.xlane.f32.xlu0 %v309
          %v311 = vpop.xlane.xlu0 %310
          %v312 = vadd.f32 %v308, %v311
          %313 = vst.msk [vmem:[#allocation3] sm:$0xff] %vm306, %v312
          // Predicated region
          $region49: #{tpu_custom_call.1} parent=43 // pred_check
            %p314 = pneg %p295
          $region50: #{tpu_custom_call.1} parent=43 // pred_check_branch
            %316 = sbr.rel (%p314) target = $region52
          $region51: #{tpu_custom_call.1} parent=43 // pred_region
            %v317 = vld [vmem:[#allocation2] sm:$0xff]
            %v318 = vmul.f32 %v317, 0.0078125
            %v319 = vld [vmem:[#allocation3] sm:$0xff]
            %v320 = vmul.f32 %v319, 0.0078125
            %v321 = vmul.f32 %v318, %v318
            %v322 = vsub.f32 %v320, %v321
            %v323 = vadd.f32 %v322, 1e-05
            %v324 = vrsqrt.pop %v323
            %v325 = vld [vmem:[%s2] sm:$0xff]
            %v326 = vmul.f32 %v325, %v324
            %327 = vst.msk [vmem:[#allocation4] sm:$0xff] %vm306, %v326
            %v328 = vld [vmem:[%s3] sm:$0xff]
            %v329 = vmul.f32 %v318, %v326
            %v330 = vsub.f32 %v328, %v329
            %331 = vst.msk [vmem:[#allocation5] sm:$0xff] %vm306, %v330
          $region52: #{tpu_custom_call.1} parent=43 // pred_fallthru
            _
        $region44: #{tpu_custom_call.1} parent=35 // pred_fallthru
          _
        %p332 = scmp.eq.s32.totalorder %s23, 1
        // Predicated region
        $region53: #{tpu_custom_call.1} parent=35 // pred_check
          %p333 = pneg %p332
        $region54: #{tpu_custom_call.1} parent=35 // pred_check_branch
          %335 = sbr.rel (%p333) target = $region56
        $region55: #{tpu_custom_call.1} parent=35 // pred_region
          %v336 = vld [vmem:[#allocation4] sm:$0xff]
          %338 = vset.pattern.permute.xlu0 0
          %339 = vperm.xlu0 %338, %v336
          %v340 = vpop.permute.xlu0 %339
          %v342 = vmul.f32 %v286, %v340
          %v343 = vld [vmem:[#allocation5] sm:$0xff]
          %345 = vset.pattern.permute.xlu0 0
          %346 = vperm.xlu0 %345, %v343
          %v347 = vpop.permute.xlu0 %346
          %v349 = vadd.f32 %v342, %v347
          %vm350 = vcmp.ge.f32.partialorder %v349, 0.0
          %v351 = vmul.f32 %v349, 0.01
          %v352 = vsel %vm350, %v349, %v351
          %353 = vst [vmem:[%s211] sm:$0xff] %v352
        $region56: #{tpu_custom_call.1} parent=35 // pred_fallthru
          _
        %s354 = sand.u32 %s130, 1
        %s355 = scalar_lea.sflag [#allocation8], %s354
        %s356 = sand.u32 %s130, 1
        %s357 = smul.addr %s356, 8
        %s358 = scalar_lea.vmem [#allocation9], %s357
        // Predicated region
        $region57: #{tpu_custom_call.1} parent=35 // pred_check
          %p359 = pneg %p140
        $region58: #{tpu_custom_call.1} parent=35 // pred_check_branch
          %361 = sbr.rel (%p359) target = $region60
        $region59: #{tpu_custom_call.1} parent=35 // pred_region
          %s362 = smul.u32 %s24, %s23
          %s364 = ssub.s32 128, 128
          %365 = vsyncadd %s355, %s364
          %s366 = smul.addr %s362, 128
          %s367 = scalar_lea.hbm %s4, %s366
          %s369 = sshll.u32 %s358, 4
          %s370 = int_to_ptr.vmem [resolvable:$true] %s369
          %372 = dma.vmem_to_hbm [thread:$0]  %s370, 128, %s367, %s355
        $region60: #{tpu_custom_call.1} parent=35 // pred_fallthru
          _
      $region36: #{tpu_custom_call.1} parent=5 // pred_fallthru
        _
      %p373 = scmp.le.s32.totalorder 2, %s14
      // Predicated region
      $region61: #{tpu_custom_call.1} parent=5 // pred_check
        %p374 = pneg %p373
      $region62: #{tpu_custom_call.1} parent=5 // pred_check_branch
        %376 = sbr.rel (%p374) target = $region64
      $region63: #{tpu_custom_call.1} parent=5 // pred_region
        %s377 = ssub.s32 %s14, 2
        // Predicated region
        $region65: #{tpu_custom_call.1} parent=63 // pred_check
          %p378 = pneg %p146
        $region66: #{tpu_custom_call.1} parent=63 // pred_check_branch
          %380 = sbr.rel (%p378) target = $region68
        $region67: #{tpu_custom_call.1} parent=63 // pred_region
          %s381 = sand.u32 %s131, 1
          %s382 = scalar_lea.sflag [#allocation8], %s381
          %s383 = sand.u32 %s131, 1
          %s384 = smul.addr %s383, 8
          %s385 = scalar_lea.vmem [#allocation9], %s384
          %386 = dma.done %s382, 128
        $region68: #{tpu_custom_call.1} parent=63 // pred_fallthru
          _
      $region64: #{tpu_custom_call.1} parent=5 // pred_fallthru
        _
    $region6: #{tpu_custom_call.1} parent=1 // loop_footer
      %s18 = sadd.s32 1, %s14
    $region7: #{tpu_custom_call.1} parent=1 // loop_footer_branch
      %13 = sbr.rel target = $region3
    $region8: #{tpu_custom_call.1} parent=1 // loop_exit
      _
    %387 = vsyncpa [#allocation7], 1
    %s388 = scalar_lea.sflag [#allocation7], 1
    %389 = vsyncpa %s388, 1
    %390 = vsyncpa [#allocation8], 1
    %s391 = scalar_lea.sflag [#allocation8], 1
    %392 = vsyncpa %s391, 1

</llo_original>
